<compile_context>
chip_gen: v6e
topology: v6e:2x2x1
jax: 0.10.0
libtpu: 0.0.40
codegen_flags: <defaults>
</compile_context>

<pallas_src>
import functools

import jax
import jax.numpy as jnp
from jax.experimental import pallas as pl
from jax.experimental.pallas import tpu as pltpu


# ---------------------------------------------------------------------------
# helpers
# ---------------------------------------------------------------------------
def _round_up(x, m):
    return (x + m - 1) // m * m


def _cdiv(a, b):
    return (a + b - 1) // b


def _vmem_capacity_bytes():
    """Per-core VMEM capacity; conservative 64 MiB fallback (v7x)."""
    try:
        info = pltpu.get_tpu_info()
        cap = getattr(info, "vmem_capacity_bytes", None)
        if cap:
            return int(cap)
    except Exception:
        pass
    return 64 * 1024 * 1024


def _resident_spec(shape, index_map):
    """BlockSpec for a grid-invariant (constant index_map) operand.

    Fetched once; a single VMEM buffer suffices, so request Buffered(1) to
    avoid wasting VMEM on the dead second pipeline buffer.  Fall back to the
    default spec if this JAX version does not take pipeline_mode.
    """
    if hasattr(pl, "Buffered"):
        try:
            return pl.BlockSpec(shape, index_map, pipeline_mode=pl.Buffered(1))
        except TypeError:
            pass
    return pl.BlockSpec(shape, index_map)


def _choose_tiling(batch, in_size, out_pad, weight_bytes, vmem_cap):
    """Pick (tile_b, padded_batch, n_steps) from problem size and VMEM."""
    budget = int(0.6 * vmem_cap)                      # headroom for Mosaic scratch
    # per-row VMEM: double-buffered bf16 x tile + double-buffered bf16 out tile
    row_bytes = 2 * (in_size * 2 + out_pad * 2)
    avail = max(budget - weight_bytes, 64 * 1024)
    tile_cap = max(8, (avail // row_bytes) // 8 * 8)
    # bigger tiles on 128 MiB parts (v5e/v6e); 512 on 64 MiB v7x
    tile_b_max = 1024 if vmem_cap >= 100 * 1024 * 1024 else 512
    tile_cap = min(tile_cap, tile_b_max)

    # >= 2 grid steps for nontrivial batches: feeds both v7x TensorCores and
    # gives the auto-pipeline something to overlap; keep the step count even.
    min_steps = 2 if batch >= 16 else 1
    n_steps = max(min_steps, _cdiv(batch, tile_cap))
    if n_steps > 1 and n_steps % 2:
        n_steps += 1
    tile_b = _round_up(_cdiv(batch, n_steps), 8)      # <= 8*n_steps padded rows
    padded_batch = tile_b * n_steps
    return tile_b, padded_batch, n_steps


# ---------------------------------------------------------------------------
# kernel
# ---------------------------------------------------------------------------
def _mlp_kernel(x_ref, w1_ref, b1_ref, wh_ref, bh_ref, wf_ref, bf_ref, o_ref,
                *, n_hidden):
    # x is already bf16; accumulate in f32 on the MXU.
    h = jnp.dot(x_ref[...], w1_ref[...], preferred_element_type=jnp.float32)
    h = jnp.maximum(h + b1_ref[...], 0.0)

    # Hidden layers: statically unrolled (n_hidden is a small compile-time
    # constant for this module).
    for l in range(n_hidden):
        h = jnp.dot(h.astype(jnp.bfloat16), wh_ref[l],
                    preferred_element_type=jnp.float32)
        h = jnp.maximum(h + bh_ref[l], 0.0)

    y = jnp.dot(h.astype(jnp.bfloat16), wf_ref[...],
                preferred_element_type=jnp.float32)
    o_ref[...] = jax.nn.sigmoid(y + bf_ref[...]).astype(o_ref.dtype)


# ---------------------------------------------------------------------------
# wrapper
# ---------------------------------------------------------------------------
def prepare_params(params):
    """Pad + cast parameters ONCE (hoisted out of the per-call path).

    Zero padding is exact: padded activation columns stay 0 through ReLU and
    padded output columns are sliced off in JAX.
    """
    w1, b1, wh, bh, wf, bf = params
    in_size, nnodes = w1.shape
    out_size = wf.shape[1]
    n_hidden = wh.shape[0]
    nn_pad = _round_up(max(nnodes, 1), 128)
    out_pad = _round_up(max(out_size, 1), 128)

    bf16 = jnp.bfloat16
    w1_p = jnp.zeros((in_size, nn_pad), bf16).at[:, :nnodes].set(w1.astype(bf16))
    b1_p = jnp.zeros((1, nn_pad), jnp.float32).at[:, :nnodes].set(b1)
    nh = max(n_hidden, 1)  # guard: zero-sized VMEM operands may not lower
    wh_p = jnp.zeros((nh, nn_pad, nn_pad), bf16)
    bh_p = jnp.zeros((nh, 1, nn_pad), jnp.float32)
    if n_hidden > 0:
        wh_p = wh_p.at[:, :nnodes, :nnodes].set(wh.astype(bf16))
        bh_p = bh_p.at[:, :, :nnodes].set(bh)
    wf_p = jnp.zeros((nn_pad, out_pad), bf16).at[:nnodes, :out_size].set(
        wf.astype(bf16))
    bf_p = jnp.zeros((1, out_pad), jnp.float32).at[:, :out_size].set(bf)

    meta = dict(in_size=in_size, nnodes=nnodes, out_size=out_size,
                n_hidden=n_hidden, nn_pad=nn_pad, out_pad=out_pad)
    return (w1_p, b1_p, wh_p, bh_p, wf_p, bf_p), meta


def mlp_adjustable_forward(x, prepared, meta):
    """x: (batch, seq_len, features) float32.  Returns (batch, output_size) f32."""
    w1_p, b1_p, wh_p, bh_p, wf_p, bf_p = prepared
    batch, seq_len, features = x.shape
    in_size = seq_len * features
    assert in_size == meta["in_size"], (in_size, meta["in_size"])
    nn_pad, out_pad = meta["nn_pad"], meta["out_pad"]
    n_hidden, out_size = meta["n_hidden"], meta["out_size"]
    nh = wh_p.shape[0]

    vmem_cap = _vmem_capacity_bytes()
    weight_bytes = sum(int(a.size) * a.dtype.itemsize for a in prepared)
    tile_b, padded_batch, n_steps = _choose_tiling(
        batch, in_size, out_pad, weight_bytes, vmem_cap)

    # x -> (padded_batch, in_size) bf16: cast folded into the same copy as the
    # reshape/pad (halves x HBM read + VMEM tile vs f32).
    x2d = x.reshape(batch, in_size).astype(jnp.bfloat16)
    if padded_batch != batch:
        x2d = jnp.pad(x2d, ((0, padded_batch - batch), (0, 0)))

    # VMEM budget from the actual tiles: double-buffered x/out + resident weights.
    vmem_need = (2 * tile_b * in_size * 2
                 + 2 * tile_b * out_pad * 2
                 + weight_bytes)
    vmem_limit = int(min(max(vmem_need + 8 * 1024 * 1024, 16 * 1024 * 1024),
                         0.9 * vmem_cap))

    # Honest cost estimate: the work the kernel actually performs (padded dims).
    cost = pl.CostEstimate(
        flops=2 * padded_batch * (in_size * nn_pad
                                  + n_hidden * nn_pad * nn_pad
                                  + nn_pad * out_pad),
        transcendentals=padded_batch * out_pad,
        bytes_accessed=(int(x2d.size) * 2
                        + weight_bytes
                        + padded_batch * out_pad * 2),
    )

    kernel = functools.partial(_mlp_kernel, n_hidden=n_hidden)
    out_padded = pl.pallas_call(
        kernel,
        out_shape=jax.ShapeDtypeStruct((padded_batch, out_pad), jnp.bfloat16),
        grid=(n_steps,),
        in_specs=[
            pl.BlockSpec((tile_b, in_size), lambda i: (i, 0)),          # x tile (double-buffered)
            _resident_spec((in_size, nn_pad), lambda i: (0, 0)),        # w1 (resident)
            _resident_spec((1, nn_pad), lambda i: (0, 0)),              # b1
            _resident_spec((nh, nn_pad, nn_pad), lambda i: (0, 0, 0)),  # wh stack
            _resident_spec((nh, 1, nn_pad), lambda i: (0, 0, 0)),       # bh stack
            _resident_spec((nn_pad, out_pad), lambda i: (0, 0)),        # wf
            _resident_spec((1, out_pad), lambda i: (0, 0)),             # bf
        ],
        out_specs=pl.BlockSpec((tile_b, out_pad), lambda i: (i, 0)),
        compiler_params=pltpu.CompilerParams(
            dimension_semantics=("parallel",),
            vmem_limit_bytes=vmem_limit,
        ),
        cost_estimate=cost,
    )(x2d, w1_p, b1_p, wh_p, bh_p, wf_p, bf_p)

    return out_padded[:batch, :out_size].astype(jnp.float32)


# ---------------------------------------------------------------------------
# parameter init + references
# ---------------------------------------------------------------------------
def init_params(key, input_size, output_size, n_hidden_layers=4, nnodes=32):
    """Deterministic synthetic parameters mirroring MLP_Adjustable.__init__
    (init_weights=True uniform ranges).  Weights stored as (in, out)."""
    # Replicate the `if i + 2 == nnodes: break` hidden-layer construction.
    n_hidden = 0
    for i in range(n_hidden_layers):
        if i + 2 == nnodes:
            break
        n_hidden += 1

    a = 3.0 ** 0.5 / nnodes
    keys = jax.random.split(key, 6)
    w1 = jax.random.uniform(keys[0], (input_size, nnodes), jnp.float32, -a, a)
    b1 = jax.random.uniform(keys[1], (1, nnodes), jnp.float32, -a, a)
    wh = jax.random.uniform(keys[2], (max(n_hidden, 1), nnodes, nnodes),
                            jnp.float32, -a, a)[:n_hidden]
    bh = jax.random.uniform(keys[3], (max(n_hidden, 1), 1, nnodes),
                            jnp.float32, -a, a)[:n_hidden]
    wf = jax.random.uniform(keys[4], (nnodes, output_size), jnp.float32,
                            -0.05, 0.05)
    bf = jax.random.uniform(keys[5], (1, output_size), jnp.float32,
                            -0.05, 0.05)
    return (w1, b1, wh, bh, wf, bf)


def _reference_forward_bf16(x, params):
    """Pure-JAX reference matching the kernel's precision (bf16 matmul inputs,
    f32 accumulate, bf16 output)."""
    w1, b1, wh, bh, wf, bf = params
    b, s, f = x.shape
    bf16 = jnp.bfloat16
    h = x.reshape(b, s * f).astype(bf16)
    h = jnp.dot(h, w1.astype(bf16), preferred_element_type=jnp.float32) + b1
    h = jnp.maximum(h, 0.0)
    for l in range(wh.shape[0]):
        h = jnp.dot(h.astype(bf16), wh[l].astype(bf16),
                    preferred_element_type=jnp.float32) + bh[l]
        h = jnp.maximum(h, 0.0)
    y = jnp.dot(h.astype(bf16), wf.astype(bf16),
                preferred_element_type=jnp.float32) + bf
    return jax.nn.sigmoid(y).astype(bf16).astype(jnp.float32)


def _reference_forward_f32(x, params):
    """Full-precision reference (gross sanity check)."""
    w1, b1, wh, bh, wf, bf = params
    b, s, f = x.shape
    h = jnp.maximum(x.reshape(b, s * f) @ w1 + b1, 0.0)
    for l in range(wh.shape[0]):
        h = jnp.maximum(h @ wh[l] + bh[l], 0.0)
    return jax.nn.sigmoid(h @ wf + bf)


# ---------------------------------------------------------------------------
# main
# ---------------------------------------------------------------------------
if __name__ == "__main__":
    # Small shapes consistent with the module: seq_len * features = input_size.
    batch, seq_len, features = 2, 8, 4
    input_size = seq_len * features          # 32
    output_size = 2
    n_hidden_layers = 4
    nnodes = 32

    key = jax.random.PRNGKey(0)
    kx, kp, kx2 = jax.random.split(key, 3)
    params = init_params(kp, input_size, output_size,
                         n_hidden_layers=n_hidden_layers, nnodes=nnodes)
    prepared, meta = prepare_params(params)   # hoisted: done once, reused below

    # --- case 1: tiny batch (single grid step) -----------------------------
    x = jax.random.normal(kx, (batch, seq_len, features), jnp.float32)
    out = jax.block_until_ready(mlp_adjustable_forward(x, prepared, meta))
    assert out.shape == (batch, output_size), out.shape
    assert jnp.allclose(out, _reference_forward_bf16(x, params),
                        atol=2e-3, rtol=2e-3), "mismatch vs bf16-matched reference"
    assert jnp.allclose(out, _reference_forward_f32(x, params),
                        atol=5e-2, rtol=5e-2), "mismatch vs f32 reference"

    # --- case 2: odd batch -> multi-step grid + row padding path -----------
    batch2 = 37
    x2 = jax.random.normal(kx2, (batch2, seq_len, features), jnp.float32)
    out2 = jax.block_until_ready(mlp_adjustable_forward(x2, prepared, meta))
    assert out2.shape == (batch2, output_size), out2.shape
    assert jnp.allclose(out2, _reference_forward_bf16(x2, params),
                        atol=2e-3, rtol=2e-3), "mismatch vs bf16-matched reference (batch=37)"
    assert jnp.allclose(out2, _reference_forward_f32(x2, params),
                        atol=5e-2, rtol=5e-2), "mismatch vs f32 reference (batch=37)"

    print("KERNEL_OK")
</pallas_src>

<mosaic_0001>
module attributes {stable_mosaic.version = 11 : i64} {
  func.func @_mlp_kernel(%arg0: i32, %arg1: memref<8x32xbf16, #tpu.memory_space<vmem>>, %arg2: memref<32x128xbf16, #tpu.memory_space<vmem>>, %arg3: memref<1x128xf32, #tpu.memory_space<vmem>>, %arg4: memref<4x128x128xbf16, #tpu.memory_space<vmem>>, %arg5: memref<4x1x128xf32, #tpu.memory_space<vmem>>, %arg6: memref<128x128xbf16, #tpu.memory_space<vmem>>, %arg7: memref<1x128xf32, #tpu.memory_space<vmem>>, %arg8: memref<8x128xbf16, #tpu.memory_space<vmem>>) attributes {dimension_semantics = [#tpu.dimension_semantics<parallel>], iteration_bounds = array<i64: 1>, scalar_prefetch = 0 : i64, scratch_operands = 0 : i64, tpu.core_type = #tpu.core_type<tc>, window_params = [{transform_indices = @transform_0, window_bounds = array<i64: 8, 32>}, {pipeline_mode = #tpu.pipeline_mode<synchronous>, transform_indices = @transform_1, window_bounds = array<i64: 32, 128>}, {pipeline_mode = #tpu.pipeline_mode<synchronous>, transform_indices = @transform_2, window_bounds = array<i64: 1, 128>}, {pipeline_mode = #tpu.pipeline_mode<synchronous>, transform_indices = @transform_3, window_bounds = array<i64: 4, 128, 128>}, {pipeline_mode = #tpu.pipeline_mode<synchronous>, transform_indices = @transform_4, window_bounds = array<i64: 4, 1, 128>}, {pipeline_mode = #tpu.pipeline_mode<synchronous>, transform_indices = @transform_5, window_bounds = array<i64: 128, 128>}, {pipeline_mode = #tpu.pipeline_mode<synchronous>, transform_indices = @transform_6, window_bounds = array<i64: 1, 128>}, {transform_indices = @transform_7, window_bounds = array<i64: 8, 128>}]} {
    %c0 = arith.constant 0 : index
    %c0_0 = arith.constant 0 : index
    %0 = vector.load %arg1[%c0, %c0_0] : memref<8x32xbf16, #tpu.memory_space<vmem>>, vector<8x32xbf16>
    %c0_1 = arith.constant 0 : index
    %c0_2 = arith.constant 0 : index
    %1 = vector.load %arg2[%c0_1, %c0_2] : memref<32x128xbf16, #tpu.memory_space<vmem>>, vector<32x128xbf16>
    %cst = arith.constant dense<0.000000e+00> : vector<8x128xf32>
    %2 = tpu.matmul %0, %1, %cst {dimension_numbers = #tpu.dot_dimension_numbers<[1], [0], [0], [1], [0, 0, 1, 1], [], []>} : vector<8x32xbf16>, vector<32x128xbf16>, vector<8x128xf32> -> vector<8x128xf32>
    %c0_3 = arith.constant 0 : index
    %c0_4 = arith.constant 0 : index
    %3 = vector.load %arg3[%c0_3, %c0_4] : memref<1x128xf32, #tpu.memory_space<vmem>>, vector<1x128xf32>
    %4 = vector.broadcast %3 : vector<1x128xf32> to vector<8x128xf32>
    %5 = arith.addf %2, %4 : vector<8x128xf32>
    %cst_5 = arith.constant 0.000000e+00 : f32
    %6 = vector.broadcast %cst_5 : f32 to vector<8x128xf32>
    %7 = arith.maximumf %5, %6 : vector<8x128xf32>
    %8 = arith.truncf %7 : vector<8x128xf32> to vector<8x128xbf16>
    %c0_6 = arith.constant 0 : index
    %c0_7 = arith.constant 0 : index
    %c0_8 = arith.constant 0 : index
    %9 = vector.load %arg4[%c0_6, %c0_7, %c0_8] : memref<4x128x128xbf16, #tpu.memory_space<vmem>>, vector<1x128x128xbf16>
    %10 = vector.shape_cast %9 : vector<1x128x128xbf16> to vector<128x128xbf16>
    %cst_9 = arith.constant dense<0.000000e+00> : vector<8x128xf32>
    %11 = tpu.matmul %8, %10, %cst_9 {dimension_numbers = #tpu.dot_dimension_numbers<[1], [0], [0], [1], [0, 0, 1, 1], [], []>} : vector<8x128xbf16>, vector<128x128xbf16>, vector<8x128xf32> -> vector<8x128xf32>
    %c0_10 = arith.constant 0 : index
    %c0_11 = arith.constant 0 : index
    %c0_12 = arith.constant 0 : index
    %12 = vector.load %arg5[%c0_10, %c0_11, %c0_12] : memref<4x1x128xf32, #tpu.memory_space<vmem>>, vector<1x1x128xf32>
    %13 = vector.shape_cast %12 : vector<1x1x128xf32> to vector<1x128xf32>
    %14 = vector.broadcast %13 : vector<1x128xf32> to vector<8x128xf32>
    %15 = arith.addf %11, %14 : vector<8x128xf32>
    %cst_13 = arith.constant 0.000000e+00 : f32
    %16 = vector.broadcast %cst_13 : f32 to vector<8x128xf32>
    %17 = arith.maximumf %15, %16 : vector<8x128xf32>
    %18 = arith.truncf %17 : vector<8x128xf32> to vector<8x128xbf16>
    %c1 = arith.constant 1 : index
    %c0_14 = arith.constant 0 : index
    %c0_15 = arith.constant 0 : index
    %19 = vector.load %arg4[%c1, %c0_14, %c0_15] : memref<4x128x128xbf16, #tpu.memory_space<vmem>>, vector<1x128x128xbf16>
    %20 = vector.shape_cast %19 : vector<1x128x128xbf16> to vector<128x128xbf16>
    %cst_16 = arith.constant dense<0.000000e+00> : vector<8x128xf32>
    %21 = tpu.matmul %18, %20, %cst_16 {dimension_numbers = #tpu.dot_dimension_numbers<[1], [0], [0], [1], [0, 0, 1, 1], [], []>} : vector<8x128xbf16>, vector<128x128xbf16>, vector<8x128xf32> -> vector<8x128xf32>
    %c1_17 = arith.constant 1 : index
    %c0_18 = arith.constant 0 : index
    %c0_19 = arith.constant 0 : index
    %22 = vector.load %arg5[%c1_17, %c0_18, %c0_19] : memref<4x1x128xf32, #tpu.memory_space<vmem>>, vector<1x1x128xf32>
    %23 = vector.shape_cast %22 : vector<1x1x128xf32> to vector<1x128xf32>
    %24 = vector.broadcast %23 : vector<1x128xf32> to vector<8x128xf32>
    %25 = arith.addf %21, %24 : vector<8x128xf32>
    %cst_20 = arith.constant 0.000000e+00 : f32
    %26 = vector.broadcast %cst_20 : f32 to vector<8x128xf32>
    %27 = arith.maximumf %25, %26 : vector<8x128xf32>
    %28 = arith.truncf %27 : vector<8x128xf32> to vector<8x128xbf16>
    %c2 = arith.constant 2 : index
    %c0_21 = arith.constant 0 : index
    %c0_22 = arith.constant 0 : index
    %29 = vector.load %arg4[%c2, %c0_21, %c0_22] : memref<4x128x128xbf16, #tpu.memory_space<vmem>>, vector<1x128x128xbf16>
    %30 = vector.shape_cast %29 : vector<1x128x128xbf16> to vector<128x128xbf16>
    %cst_23 = arith.constant dense<0.000000e+00> : vector<8x128xf32>
    %31 = tpu.matmul %28, %30, %cst_23 {dimension_numbers = #tpu.dot_dimension_numbers<[1], [0], [0], [1], [0, 0, 1, 1], [], []>} : vector<8x128xbf16>, vector<128x128xbf16>, vector<8x128xf32> -> vector<8x128xf32>
    %c2_24 = arith.constant 2 : index
    %c0_25 = arith.constant 0 : index
    %c0_26 = arith.constant 0 : index
    %32 = vector.load %arg5[%c2_24, %c0_25, %c0_26] : memref<4x1x128xf32, #tpu.memory_space<vmem>>, vector<1x1x128xf32>
    %33 = vector.shape_cast %32 : vector<1x1x128xf32> to vector<1x128xf32>
    %34 = vector.broadcast %33 : vector<1x128xf32> to vector<8x128xf32>
    %35 = arith.addf %31, %34 : vector<8x128xf32>
    %cst_27 = arith.constant 0.000000e+00 : f32
    %36 = vector.broadcast %cst_27 : f32 to vector<8x128xf32>
    %37 = arith.maximumf %35, %36 : vector<8x128xf32>
    %38 = arith.truncf %37 : vector<8x128xf32> to vector<8x128xbf16>
    %c3 = arith.constant 3 : index
    %c0_28 = arith.constant 0 : index
    %c0_29 = arith.constant 0 : index
    %39 = vector.load %arg4[%c3, %c0_28, %c0_29] : memref<4x128x128xbf16, #tpu.memory_space<vmem>>, vector<1x128x128xbf16>
    %40 = vector.shape_cast %39 : vector<1x128x128xbf16> to vector<128x128xbf16>
    %cst_30 = arith.constant dense<0.000000e+00> : vector<8x128xf32>
    %41 = tpu.matmul %38, %40, %cst_30 {dimension_numbers = #tpu.dot_dimension_numbers<[1], [0], [0], [1], [0, 0, 1, 1], [], []>} : vector<8x128xbf16>, vector<128x128xbf16>, vector<8x128xf32> -> vector<8x128xf32>
    %c3_31 = arith.constant 3 : index
    %c0_32 = arith.constant 0 : index
    %c0_33 = arith.constant 0 : index
    %42 = vector.load %arg5[%c3_31, %c0_32, %c0_33] : memref<4x1x128xf32, #tpu.memory_space<vmem>>, vector<1x1x128xf32>
    %43 = vector.shape_cast %42 : vector<1x1x128xf32> to vector<1x128xf32>
    %44 = vector.broadcast %43 : vector<1x128xf32> to vector<8x128xf32>
    %45 = arith.addf %41, %44 : vector<8x128xf32>
    %cst_34 = arith.constant 0.000000e+00 : f32
    %46 = vector.broadcast %cst_34 : f32 to vector<8x128xf32>
    %47 = arith.maximumf %45, %46 : vector<8x128xf32>
    %48 = arith.truncf %47 : vector<8x128xf32> to vector<8x128xbf16>
    %c0_35 = arith.constant 0 : index
    %c0_36 = arith.constant 0 : index
    %49 = vector.load %arg6[%c0_35, %c0_36] : memref<128x128xbf16, #tpu.memory_space<vmem>>, vector<128x128xbf16>
    %cst_37 = arith.constant dense<0.000000e+00> : vector<8x128xf32>
    %50 = tpu.matmul %48, %49, %cst_37 {dimension_numbers = #tpu.dot_dimension_numbers<[1], [0], [0], [1], [0, 0, 1, 1], [], []>} : vector<8x128xbf16>, vector<128x128xbf16>, vector<8x128xf32> -> vector<8x128xf32>
    %c0_38 = arith.constant 0 : index
    %c0_39 = arith.constant 0 : index
    %51 = vector.load %arg7[%c0_38, %c0_39] : memref<1x128xf32, #tpu.memory_space<vmem>>, vector<1x128xf32>
    %52 = vector.broadcast %51 : vector<1x128xf32> to vector<8x128xf32>
    %53 = arith.addf %50, %52 : vector<8x128xf32>
    %54 = arith.negf %53 : vector<8x128xf32>
    %55 = math.exp %54 : vector<8x128xf32>
    %cst_40 = arith.constant 1.000000e+00 : f32
    %56 = vector.broadcast %cst_40 : f32 to vector<8x128xf32>
    %57 = arith.addf %56, %55 : vector<8x128xf32>
    %58 = arith.divf %56, %57 : vector<8x128xf32>
    %59 = arith.truncf %58 : vector<8x128xf32> to vector<8x128xbf16>
    %c0_41 = arith.constant 0 : index
    %c0_42 = arith.constant 0 : index
    %60 = vector.load %arg8[%c0_41, %c0_42] : memref<8x128xbf16, #tpu.memory_space<vmem>>, vector<8x128xbf16>
    tpu.vector_store %arg8[%c0_41, %c0_42], %59 {strides = array<i32>} : memref<8x128xbf16, #tpu.memory_space<vmem>>, vector<8x128xbf16>,
    return
  }
  func.func @transform_0(%arg0: i32) -> (i32, i32) {
    %c0_i32 = arith.constant 0 : i32
    %c0_i32_0 = arith.constant 0 : i32
    return %arg0, %c0_i32 : i32, i32
  }
  func.func @transform_1(%arg0: i32) -> (i32, i32) {
    %c0_i32 = arith.constant 0 : i32
    %c0_i32_0 = arith.constant 0 : i32
    %c0_i32_1 = arith.constant 0 : i32
    return %c0_i32, %c0_i32_0 : i32, i32
  }
  func.func @transform_2(%arg0: i32) -> (i32, i32) {
    %c0_i32 = arith.constant 0 : i32
    %c0_i32_0 = arith.constant 0 : i32
    %c0_i32_1 = arith.constant 0 : i32
    return %c0_i32, %c0_i32_0 : i32, i32
  }
  func.func @transform_3(%arg0: i32) -> (i32, i32, i32) {
    %c0_i32 = arith.constant 0 : i32
    %c0_i32_0 = arith.constant 0 : i32
    %c0_i32_1 = arith.constant 0 : i32
    %c0_i32_2 = arith.constant 0 : i32
    return %c0_i32, %c0_i32_0, %c0_i32_1 : i32, i32, i32
  }
  func.func @transform_4(%arg0: i32) -> (i32, i32, i32) {
    %c0_i32 = arith.constant 0 : i32
    %c0_i32_0 = arith.constant 0 : i32
    %c0_i32_1 = arith.constant 0 : i32
    %c0_i32_2 = arith.constant 0 : i32
    return %c0_i32, %c0_i32_0, %c0_i32_1 : i32, i32, i32
  }
  func.func @transform_5(%arg0: i32) -> (i32, i32) {
    %c0_i32 = arith.constant 0 : i32
    %c0_i32_0 = arith.constant 0 : i32
    %c0_i32_1 = arith.constant 0 : i32
    return %c0_i32, %c0_i32_0 : i32, i32
  }
  func.func @transform_6(%arg0: i32) -> (i32, i32) {
    %c0_i32 = arith.constant 0 : i32
    %c0_i32_0 = arith.constant 0 : i32
    %c0_i32_1 = arith.constant 0 : i32
    return %c0_i32, %c0_i32_0 : i32, i32
  }
  func.func @transform_7(%arg0: i32) -> (i32, i32) {
    %c0_i32 = arith.constant 0 : i32
    %c0_i32_0 = arith.constant 0 : i32
    return %arg0, %c0_i32 : i32, i32
  }
}

</mosaic_0001>

<llo_original>
// kernel: tpu_custom_call.1
$region0: #{tpu_custom_call.1}
  #allocation0 [shape = 'u32[]', space=smem, size = 0x4, offset = 0x4, fixed_abs, tag = 'smem constant byte address 0x4 - core index']
  #allocation1 [shape = 'u32[144,128]{1,0:T(1,128)}', space=vmem, size = 0x12000, scoped, tag = 'internal scratch']
  %s0 = inlined_call_operand.hbm [shape: bf16[8,32], index: 0, kind: input, shape index: {}]
  %s1 = inlined_call_operand.hbm [shape: bf16[32,128], index: 1, kind: input, shape index: {}]
  %s2 = inlined_call_operand.vmem [shape: f32[1,128], index: 2, kind: input, shape index: {}]
  %s3 = inlined_call_operand.hbm [shape: bf16[4,128,128], index: 3, kind: input, shape index: {}]
  %s4 = inlined_call_operand.vmem [shape: f32[4,1,128], index: 4, kind: input, shape index: {}]
  %s5 = inlined_call_operand.hbm [shape: bf16[128,128], index: 5, kind: input, shape index: {}]
  %s6 = inlined_call_operand.vmem [shape: f32[1,128], index: 6, kind: input, shape index: {}]
  %s7 = inlined_call_operand.hbm [shape: bf16[8,128], index: 7, kind: output, shape index: {}]
  %s8 = sld [smem:[#allocation0]]
  $region54: #{tpu_custom_call.1} parent=0
    _
  %s10 = ssub.s32 1, %s8
  %s11 = scalar_select 0, %s10, %s8
  $region1: #{tpu_custom_call.1} parent=0
    #allocation2 [shape = 'u8[2048]{0}', space=vmem, size = 0x800, scoped, tag = 'input window, operand 0, single buffered']
    #allocation3 [shape = 's32[1]{0}', space=sflag, size = 0x4, scoped, tag = 'scoped memory for tpu_custom_call.1']
    #allocation4 [shape = 's32[1]{0}', space=sflag, size = 0x4, scoped, tag = 'scoped memory for tpu_custom_call.1']
    #allocation5 [shape = 'u8[8192]{0}', space=vmem, size = 0x2000, scoped, tag = 'input window, operand 1, single buffered']
    #allocation6 [shape = 's32[1]{0}', space=sflag, size = 0x4, scoped, tag = 'scoped memory for tpu_custom_call.1']
    #allocation7 [shape = 'u8[131072]{0}', space=vmem, size = 0x20000, scoped, tag = 'input window, operand 3, single buffered']
    #allocation8 [shape = 'u8[32768]{0}', space=vmem, size = 0x8000, scoped, tag = 'input window, operand 5, single buffered']
    #allocation9 [shape = 's32[1]{0}', space=sflag, size = 0x4, scoped, tag = 'scoped memory for tpu_custom_call.1']
    #allocation10 [shape = 'u8[2048]{0}', space=vmem, size = 0x800, scoped, tag = 'output window, operand 0, single buffered']
    %12 = vsyncpa [#allocation3], 0
    %13 = vsyncpa [#allocation6], 0
    %14 = vsyncpa [#allocation9], 0
    %15 = vsyncpa [#allocation4], 0
    // Predicated region
    $region2: #{tpu_custom_call.1} parent=1 // pred_check
      _
    $region3: #{tpu_custom_call.1} parent=1 // pred_check_branch
      %17 = sbr.rel (0) target = $region5
    $region4: #{tpu_custom_call.1} parent=1 // pred_region
      %s19 = ssub.s32 64, 64
      %20 = vsyncadd [#allocation3], %s19
      %s22 = sshll.u32 [#allocation2], 4
      %s23 = int_to_ptr.vmem [resolvable:$true] %s22
      %25 = dma.hbm_to_vmem [thread:$0]  %s0, 64, %s23, [#allocation3]
    $region5: #{tpu_custom_call.1} parent=1 // pred_fallthru
      _
    // Predicated region
    $region6: #{tpu_custom_call.1} parent=1 // pred_check
      _
    $region7: #{tpu_custom_call.1} parent=1 // pred_check_branch
      %27 = sbr.rel (0) target = $region9
    $region8: #{tpu_custom_call.1} parent=1 // pred_region
      %s29 = ssub.s32 256, 256
      %30 = vsyncadd [#allocation6], %s29
      %s31 = sshll.u32 [#allocation5], 4
      %s32 = int_to_ptr.vmem [resolvable:$true] %s31
      %37 = dma.hbm_to_vmem [thread:$0]  %s1, 256, %s32, [#allocation6], 64, 64, 4
    $region9: #{tpu_custom_call.1} parent=1 // pred_fallthru
      _
    // Predicated region
    $region10: #{tpu_custom_call.1} parent=1 // pred_check
      _
    $region11: #{tpu_custom_call.1} parent=1 // pred_check_branch
      %39 = sbr.rel (0) target = $region13
    $region12: #{tpu_custom_call.1} parent=1 // pred_region
      _
    $region13: #{tpu_custom_call.1} parent=1 // pred_fallthru
      _
    // Predicated region
    $region14: #{tpu_custom_call.1} parent=1 // pred_check
      _
    $region15: #{tpu_custom_call.1} parent=1 // pred_check_branch
      %41 = sbr.rel (0) target = $region17
    $region16: #{tpu_custom_call.1} parent=1 // pred_region
      %s43 = ssub.s32 4096, 4096
      %44 = vsyncadd [#allocation6], %s43
      %s45 = sshll.u32 [#allocation7], 4
      %s46 = int_to_ptr.vmem [resolvable:$true] %s45
      %51 = dma.hbm_to_vmem [thread:$0]  %s3, 4096, %s46, [#allocation6], 64, 64, 4
    $region17: #{tpu_custom_call.1} parent=1 // pred_fallthru
      _
    // Predicated region
    $region18: #{tpu_custom_call.1} parent=1 // pred_check
      _
    $region19: #{tpu_custom_call.1} parent=1 // pred_check_branch
      %53 = sbr.rel (0) target = $region21
    $region20: #{tpu_custom_call.1} parent=1 // pred_region
      _
    $region21: #{tpu_custom_call.1} parent=1 // pred_fallthru
      _
    // Predicated region
    $region22: #{tpu_custom_call.1} parent=1 // pred_check
      _
    $region23: #{tpu_custom_call.1} parent=1 // pred_check_branch
      %55 = sbr.rel (0) target = $region25
    $region24: #{tpu_custom_call.1} parent=1 // pred_region
      %s57 = ssub.s32 1024, 1024
      %58 = vsyncadd [#allocation9], %s57
      %s59 = sshll.u32 [#allocation8], 4
      %s60 = int_to_ptr.vmem [resolvable:$true] %s59
      %65 = dma.hbm_to_vmem [thread:$0]  %s5, 1024, %s60, [#allocation9], 64, 64, 4
    $region25: #{tpu_custom_call.1} parent=1 // pred_fallthru
      _
    // Predicated region
    $region26: #{tpu_custom_call.1} parent=1 // pred_check
      _
    $region27: #{tpu_custom_call.1} parent=1 // pred_check_branch
      %67 = sbr.rel (0) target = $region29
    $region28: #{tpu_custom_call.1} parent=1 // pred_region
      _
    $region29: #{tpu_custom_call.1} parent=1 // pred_fallthru
      _
    // Predicated region
    $region30: #{tpu_custom_call.1} parent=1 // pred_check
      _
    $region31: #{tpu_custom_call.1} parent=1 // pred_check_branch
      %69 = sbr.rel (0) target = $region33
    $region32: #{tpu_custom_call.1} parent=1 // pred_region
      %70 = dma.done [#allocation3], 64
    $region33: #{tpu_custom_call.1} parent=1 // pred_fallthru
      _
    // Predicated region
    $region34: #{tpu_custom_call.1} parent=1 // pred_check
      _
    $region35: #{tpu_custom_call.1} parent=1 // pred_check_branch
      %72 = sbr.rel (0) target = $region37
    $region36: #{tpu_custom_call.1} parent=1 // pred_region
      %73 = dma.done [#allocation6], 256
    $region37: #{tpu_custom_call.1} parent=1 // pred_fallthru
      _
    // Predicated region
    $region38: #{tpu_custom_call.1} parent=1 // pred_check
      _
    $region39: #{tpu_custom_call.1} parent=1 // pred_check_branch
      %75 = sbr.rel (0) target = $region41
    $region40: #{tpu_custom_call.1} parent=1 // pred_region
      %76 = dma.done [#allocation6], 4096
    $region41: #{tpu_custom_call.1} parent=1 // pred_fallthru
      _
    // Predicated region
    $region42: #{tpu_custom_call.1} parent=1 // pred_check
      _
    $region43: #{tpu_custom_call.1} parent=1 // pred_check_branch
      %78 = sbr.rel (0) target = $region45
    $region44: #{tpu_custom_call.1} parent=1 // pred_region
      %79 = dma.done [#allocation9], 1024
    $region45: #{tpu_custom_call.1} parent=1 // pred_fallthru
      _
    %v81 = vld [vmem:[#allocation2] sm:$0xf]
    %v82 = vld [vmem:[#allocation5] sm:$0xf]
    %v83 = vld [vmem:[#allocation5 + $0x4] sm:$0xf]
    %v84 = vld [vmem:[#allocation5 + $0x8] sm:$0xf]
    %v85 = vld [vmem:[#allocation5 + $0xc] sm:$0xf]
    %v86 = vld [vmem:[%s2] sm:$0x1]
    %v88 = vlaneseq
    %v89 = vshrl.u32 %v88, 7
    %v90 = vsub.s32 0, %v89
    %v91 = vrot.slane %v86, %v90
    %v97 = vunpack.c.l.b16 %v82
    %v98 = vunpack.c.l.b16 %v83
    %v99 = vunpack.c.l.b16 %v84
    %v100 = vunpack.c.l.b16 %v85
    %v101 = vpack.c.b16 %v98, %v97
    %v102 = vpack.c.b16 %v100, %v99
    %vm105 = vcmask 261120
    %v107 = vsel %vm105, %v81, 0
    %109 = vmatprep.subr.bf16.mxu0 0
    %110 = vmatpush1.bf16.msra.mxu0 0
    %111 = vmatprep.subr.bf16.mxu0 0
    %112 = vmatpush1.bf16.msra.mxu0 0
    %113 = vmatprep.subr.bf16.mxu0 0
    %114 = vmatpush1.bf16.msra.mxu0 0
    %115 = vmatprep.subr.bf16.mxu0 0
    %116 = vmatpush1.bf16.msra.mxu0 0
    %117 = vmatprep.subr.bf16.mxu0 0
    %118 = vmatpush1.bf16.msra.mxu0 0
    %119 = vmatprep.subr.bf16.mxu0 0
    %120 = vmatpush1.bf16.msra.mxu0 0
    %121 = vmatprep.subr.bf16.mxu0 0
    %122 = vmatpush1.bf16.msra.mxu0 %v102
    %123 = vmatprep.subr.bf16.mxu0 0
    %124 = vmatpush1.bf16.msra.mxu0 %v101
    %125 = vmatprep.subr.bf16.mxu0 0
    %126 = vmatpush2.bf16.msra.mxu0 0
    %127 = vmatprep.subr.bf16.mxu0 0
    %128 = vmatpush2.bf16.msra.mxu0 0
    %129 = vmatprep.subr.bf16.mxu0 0
    %130 = vmatpush2.bf16.msra.mxu0 0
    %131 = vmatprep.subr.bf16.mxu0 0
    %132 = vmatpush2.bf16.msra.mxu0 0
    %133 = vmatprep.subr.bf16.mxu0 0
    %134 = vmatpush2.bf16.msra.mxu0 0
    %135 = vmatprep.subr.bf16.mxu0 0
    %136 = vmatpush2.bf16.msra.mxu0 0
    %137 = vmatprep.subr.bf16.mxu0 0
    %138 = vmatpush2.bf16.msra.mxu0 0
    %139 = vmatprep.subr.bf16.mxu0 0
    %140 = vmatpush2.bf16.msra.mxu0 0
    %141 = vmatprep.mubr.bf16.mxu0 0
    %142 = vmatmul.mubr.bf16.gmra.mxu0 %v107
    %v143 = vpop.f32.mrf.mxu0
    %v144 = vadd.f32 %v91, %v143
    %v145 = vpop.f32.mrf.mxu0
    %v146 = vpop.f32.mrf.mxu0
    %v147 = vpop.f32.mrf.mxu0
    %148 = vdwg.mxu0
    %v149 = vmax.f32 %v144, 0.0
    %v150 = vpack.c.bf16 %v149, %v149
    %v151 = vld [vmem:[#allocation7] sm:$0xf]
    %v152 = vld [vmem:[#allocation7 + $0x4] sm:$0xf]
    %v153 = vld [vmem:[#allocation7 + $0x8] sm:$0xf]
    %v154 = vld [vmem:[#allocation7 + $0xc] sm:$0xf]
    %v155 = vld [vmem:[#allocation7 + $0x10] sm:$0xf]
    %v156 = vld [vmem:[#allocation7 + $0x14] sm:$0xf]
    %v157 = vld [vmem:[#allocation7 + $0x18] sm:$0xf]
    %v158 = vld [vmem:[#allocation7 + $0x1c] sm:$0xf]
    %v159 = vld [vmem:[#allocation7 + $0x20] sm:$0xf]
    %v160 = vld [vmem:[#allocation7 + $0x24] sm:$0xf]
    %v161 = vld [vmem:[#allocation7 + $0x28] sm:$0xf]
    %v162 = vld [vmem:[#allocation7 + $0x2c] sm:$0xf]
    %v163 = vld [vmem:[#allocation7 + $0x30] sm:$0xf]
    %v164 = vld [vmem:[#allocation7 + $0x34] sm:$0xf]
    %v165 = vld [vmem:[#allocation7 + $0x38] sm:$0xf]
    %v166 = vld [vmem:[#allocation7 + $0x3c] sm:$0xf]
    %v167 = vld [vmem:[%s4] sm:$0x1]
    %v169 = vlaneseq
    %v170 = vshrl.u32 %v169, 7
    %v171 = vsub.s32 0, %v170
    %v172 = vrot.slane %v167, %v171
    %v190 = vunpack.c.l.b16 %v151
    %v191 = vunpack.c.l.b16 %v152
    %v192 = vunpack.c.l.b16 %v153
    %v193 = vunpack.c.l.b16 %v154
    %v194 = vunpack.c.l.b16 %v155
    %v195 = vunpack.c.l.b16 %v156
    %v196 = vunpack.c.l.b16 %v157
    %v197 = vunpack.c.l.b16 %v158
    %v198 = vunpack.c.l.b16 %v159
    %v199 = vunpack.c.l.b16 %v160
    %v200 = vunpack.c.l.b16 %v161
    %v201 = vunpack.c.l.b16 %v162
    %v202 = vunpack.c.l.b16 %v163
    %v203 = vunpack.c.l.b16 %v164
    %v204 = vunpack.c.l.b16 %v165
    %v205 = vunpack.c.l.b16 %v166
    %v206 = vpack.c.b16 %v191, %v190
    %v207 = vpack.c.b16 %v193, %v192
    %v208 = vpack.c.b16 %v195, %v194
    %v209 = vpack.c.b16 %v197, %v196
    %v210 = vpack.c.b16 %v199, %v198
    %v211 = vpack.c.b16 %v201, %v200
    %v212 = vpack.c.b16 %v203, %v202
    %v213 = vpack.c.b16 %v205, %v204
    %222 = vmatprep.subr.bf16.mxu0 0
    %223 = vmatpush1.bf16.msra.mxu0 %v213
    %224 = vmatprep.subr.bf16.mxu0 0
    %225 = vmatpush1.bf16.msra.mxu0 %v212
    %226 = vmatprep.subr.bf16.mxu0 0
    %227 = vmatpush1.bf16.msra.mxu0 %v211
    %228 = vmatprep.subr.bf16.mxu0 0
    %229 = vmatpush1.bf16.msra.mxu0 %v210
    %230 = vmatprep.subr.bf16.mxu0 0
    %231 = vmatpush1.bf16.msra.mxu0 %v209
    %232 = vmatprep.subr.bf16.mxu0 0
    %233 = vmatpush1.bf16.msra.mxu0 %v208
    %234 = vmatprep.subr.bf16.mxu0 0
    %235 = vmatpush1.bf16.msra.mxu0 %v207
    %236 = vmatprep.subr.bf16.mxu0 0
    %237 = vmatpush1.bf16.msra.mxu0 %v206
    %238 = vmatprep.subr.bf16.mxu0 0
    %239 = vmatpush2.bf16.msra.mxu0 0
    %240 = vmatprep.subr.bf16.mxu0 0
    %241 = vmatpush2.bf16.msra.mxu0 0
    %242 = vmatprep.subr.bf16.mxu0 0
    %243 = vmatpush2.bf16.msra.mxu0 0
    %244 = vmatprep.subr.bf16.mxu0 0
    %245 = vmatpush2.bf16.msra.mxu0 0
    %246 = vmatprep.subr.bf16.mxu0 0
    %247 = vmatpush2.bf16.msra.mxu0 0
    %248 = vmatprep.subr.bf16.mxu0 0
    %249 = vmatpush2.bf16.msra.mxu0 0
    %250 = vmatprep.subr.bf16.mxu0 0
    %251 = vmatpush2.bf16.msra.mxu0 0
    %252 = vmatprep.subr.bf16.mxu0 0
    %253 = vmatpush2.bf16.msra.mxu0 0
    %254 = vmatprep.mubr.bf16.mxu0 0
    %255 = vmatmul.mubr.bf16.gmra.mxu0 %v150
    %v256 = vpop.f32.mrf.mxu0
    %v257 = vadd.f32 %v172, %v256
    %v258 = vpop.f32.mrf.mxu0
    %v259 = vpop.f32.mrf.mxu0
    %v260 = vpop.f32.mrf.mxu0
    %261 = vdwg.mxu0
    %v262 = vmax.f32 %v257, 0.0
    %v263 = vpack.c.bf16 %v262, %v262
    %s264 = scalar_lea.vmem [#allocation7], 64
    %v265 = vld [vmem:[%s264] sm:$0xf]
    %v266 = vld [vmem:[%s264 + $0x4] sm:$0xf]
    %v267 = vld [vmem:[%s264 + $0x8] sm:$0xf]
    %v268 = vld [vmem:[%s264 + $0xc] sm:$0xf]
    %v269 = vld [vmem:[%s264 + $0x10] sm:$0xf]
    %v270 = vld [vmem:[%s264 + $0x14] sm:$0xf]
    %v271 = vld [vmem:[%s264 + $0x18] sm:$0xf]
    %v272 = vld [vmem:[%s264 + $0x1c] sm:$0xf]
    %v273 = vld [vmem:[%s264 + $0x20] sm:$0xf]
    %v274 = vld [vmem:[%s264 + $0x24] sm:$0xf]
    %v275 = vld [vmem:[%s264 + $0x28] sm:$0xf]
    %v276 = vld [vmem:[%s264 + $0x2c] sm:$0xf]
    %v277 = vld [vmem:[%s264 + $0x30] sm:$0xf]
    %v278 = vld [vmem:[%s264 + $0x34] sm:$0xf]
    %v279 = vld [vmem:[%s264 + $0x38] sm:$0xf]
    %v280 = vld [vmem:[%s264 + $0x3c] sm:$0xf]
    %s281 = scalar_lea.vmem %s4, 1
    %v282 = vld [vmem:[%s281] sm:$0x1]
    %v284 = vlaneseq
    %v285 = vshrl.u32 %v284, 7
    %v286 = vsub.s32 0, %v285
    %v287 = vrot.slane %v282, %v286
    %v305 = vunpack.c.l.b16 %v265
    %v306 = vunpack.c.l.b16 %v266
    %v307 = vunpack.c.l.b16 %v267
    %v308 = vunpack.c.l.b16 %v268
    %v309 = vunpack.c.l.b16 %v269
    %v310 = vunpack.c.l.b16 %v270
    %v311 = vunpack.c.l.b16 %v271
    %v312 = vunpack.c.l.b16 %v272
    %v313 = vunpack.c.l.b16 %v273
    %v314 = vunpack.c.l.b16 %v274
    %v315 = vunpack.c.l.b16 %v275
    %v316 = vunpack.c.l.b16 %v276
    %v317 = vunpack.c.l.b16 %v277
    %v318 = vunpack.c.l.b16 %v278
    %v319 = vunpack.c.l.b16 %v279
    %v320 = vunpack.c.l.b16 %v280
    %v321 = vpack.c.b16 %v306, %v305
    %v322 = vpack.c.b16 %v308, %v307
    %v323 = vpack.c.b16 %v310, %v309
    %v324 = vpack.c.b16 %v312, %v311
    %v325 = vpack.c.b16 %v314, %v313
    %v326 = vpack.c.b16 %v316, %v315
    %v327 = vpack.c.b16 %v318, %v317
    %v328 = vpack.c.b16 %v320, %v319
    %337 = vmatprep.subr.bf16.mxu0 0
    %338 = vmatpush1.bf16.msra.mxu0 %v328
    %339 = vmatprep.subr.bf16.mxu0 0
    %340 = vmatpush1.bf16.msra.mxu0 %v327
    %341 = vmatprep.subr.bf16.mxu0 0
    %342 = vmatpush1.bf16.msra.mxu0 %v326
    %343 = vmatprep.subr.bf16.mxu0 0
    %344 = vmatpush1.bf16.msra.mxu0 %v325
    %345 = vmatprep.subr.bf16.mxu0 0
    %346 = vmatpush1.bf16.msra.mxu0 %v324
    %347 = vmatprep.subr.bf16.mxu0 0
    %348 = vmatpush1.bf16.msra.mxu0 %v323
    %349 = vmatprep.subr.bf16.mxu0 0
    %350 = vmatpush1.bf16.msra.mxu0 %v322
    %351 = vmatprep.subr.bf16.mxu0 0
    %352 = vmatpush1.bf16.msra.mxu0 %v321
    %353 = vmatprep.subr.bf16.mxu0 0
    %354 = vmatpush2.bf16.msra.mxu0 0
    %355 = vmatprep.subr.bf16.mxu0 0
    %356 = vmatpush2.bf16.msra.mxu0 0
    %357 = vmatprep.subr.bf16.mxu0 0
    %358 = vmatpush2.bf16.msra.mxu0 0
    %359 = vmatprep.subr.bf16.mxu0 0
    %360 = vmatpush2.bf16.msra.mxu0 0
    %361 = vmatprep.subr.bf16.mxu0 0
    %362 = vmatpush2.bf16.msra.mxu0 0
    %363 = vmatprep.subr.bf16.mxu0 0
    %364 = vmatpush2.bf16.msra.mxu0 0
    %365 = vmatprep.subr.bf16.mxu0 0
    %366 = vmatpush2.bf16.msra.mxu0 0
    %367 = vmatprep.subr.bf16.mxu0 0
    %368 = vmatpush2.bf16.msra.mxu0 0
    %369 = vmatprep.mubr.bf16.mxu0 0
    %370 = vmatmul.mubr.bf16.gmra.mxu0 %v263
    %v371 = vpop.f32.mrf.mxu0
    %v372 = vadd.f32 %v287, %v371
    %v373 = vpop.f32.mrf.mxu0
    %v374 = vpop.f32.mrf.mxu0
    %v375 = vpop.f32.mrf.mxu0
    %376 = vdwg.mxu0
    %v377 = vmax.f32 %v372, 0.0
    %v378 = vpack.c.bf16 %v377, %v377
    %s379 = scalar_lea.vmem [#allocation7], 128
    %v380 = vld [vmem:[%s379] sm:$0xf]
    %v381 = vld [vmem:[%s379 + $0x4] sm:$0xf]
    %v382 = vld [vmem:[%s379 + $0x8] sm:$0xf]
    %v383 = vld [vmem:[%s379 + $0xc] sm:$0xf]
    %v384 = vld [vmem:[%s379 + $0x10] sm:$0xf]
    %v385 = vld [vmem:[%s379 + $0x14] sm:$0xf]
    %v386 = vld [vmem:[%s379 + $0x18] sm:$0xf]
    %v387 = vld [vmem:[%s379 + $0x1c] sm:$0xf]
    %v388 = vld [vmem:[%s379 + $0x20] sm:$0xf]
    %v389 = vld [vmem:[%s379 + $0x24] sm:$0xf]
    %v390 = vld [vmem:[%s379 + $0x28] sm:$0xf]
    %v391 = vld [vmem:[%s379 + $0x2c] sm:$0xf]
    %v392 = vld [vmem:[%s379 + $0x30] sm:$0xf]
    %v393 = vld [vmem:[%s379 + $0x34] sm:$0xf]
    %v394 = vld [vmem:[%s379 + $0x38] sm:$0xf]
    %v395 = vld [vmem:[%s379 + $0x3c] sm:$0xf]
    %s396 = scalar_lea.vmem %s4, 2
    %v397 = vld [vmem:[%s396] sm:$0x1]
    %v399 = vlaneseq
    %v400 = vshrl.u32 %v399, 7
    %v401 = vsub.s32 0, %v400
    %v402 = vrot.slane %v397, %v401
    %v420 = vunpack.c.l.b16 %v380
    %v421 = vunpack.c.l.b16 %v381
    %v422 = vunpack.c.l.b16 %v382
    %v423 = vunpack.c.l.b16 %v383
    %v424 = vunpack.c.l.b16 %v384
    %v425 = vunpack.c.l.b16 %v385
    %v426 = vunpack.c.l.b16 %v386
    %v427 = vunpack.c.l.b16 %v387
    %v428 = vunpack.c.l.b16 %v388
    %v429 = vunpack.c.l.b16 %v389
    %v430 = vunpack.c.l.b16 %v390
    %v431 = vunpack.c.l.b16 %v391
    %v432 = vunpack.c.l.b16 %v392
    %v433 = vunpack.c.l.b16 %v393
    %v434 = vunpack.c.l.b16 %v394
    %v435 = vunpack.c.l.b16 %v395
    %v436 = vpack.c.b16 %v421, %v420
    %v437 = vpack.c.b16 %v423, %v422
    %v438 = vpack.c.b16 %v425, %v424
    %v439 = vpack.c.b16 %v427, %v426
    %v440 = vpack.c.b16 %v429, %v428
    %v441 = vpack.c.b16 %v431, %v430
    %v442 = vpack.c.b16 %v433, %v432
    %v443 = vpack.c.b16 %v435, %v434
    %452 = vmatprep.subr.bf16.mxu0 0
    %453 = vmatpush1.bf16.msra.mxu0 %v443
    %454 = vmatprep.subr.bf16.mxu0 0
    %455 = vmatpush1.bf16.msra.mxu0 %v442
    %456 = vmatprep.subr.bf16.mxu0 0
    %457 = vmatpush1.bf16.msra.mxu0 %v441
    %458 = vmatprep.subr.bf16.mxu0 0
    %459 = vmatpush1.bf16.msra.mxu0 %v440
    %460 = vmatprep.subr.bf16.mxu0 0
    %461 = vmatpush1.bf16.msra.mxu0 %v439
    %462 = vmatprep.subr.bf16.mxu0 0
    %463 = vmatpush1.bf16.msra.mxu0 %v438
    %464 = vmatprep.subr.bf16.mxu0 0
    %465 = vmatpush1.bf16.msra.mxu0 %v437
    %466 = vmatprep.subr.bf16.mxu0 0
    %467 = vmatpush1.bf16.msra.mxu0 %v436
    %468 = vmatprep.subr.bf16.mxu0 0
    %469 = vmatpush2.bf16.msra.mxu0 0
    %470 = vmatprep.subr.bf16.mxu0 0
    %471 = vmatpush2.bf16.msra.mxu0 0
    %472 = vmatprep.subr.bf16.mxu0 0
    %473 = vmatpush2.bf16.msra.mxu0 0
    %474 = vmatprep.subr.bf16.mxu0 0
    %475 = vmatpush2.bf16.msra.mxu0 0
    %476 = vmatprep.subr.bf16.mxu0 0
    %477 = vmatpush2.bf16.msra.mxu0 0
    %478 = vmatprep.subr.bf16.mxu0 0
    %479 = vmatpush2.bf16.msra.mxu0 0
    %480 = vmatprep.subr.bf16.mxu0 0
    %481 = vmatpush2.bf16.msra.mxu0 0
    %482 = vmatprep.subr.bf16.mxu0 0
    %483 = vmatpush2.bf16.msra.mxu0 0
    %484 = vmatprep.mubr.bf16.mxu0 0
    %485 = vmatmul.mubr.bf16.gmra.mxu0 %v378
    %v486 = vpop.f32.mrf.mxu0
    %v487 = vadd.f32 %v402, %v486
    %v488 = vpop.f32.mrf.mxu0
    %v489 = vpop.f32.mrf.mxu0
    %v490 = vpop.f32.mrf.mxu0
    %491 = vdwg.mxu0
    %v492 = vmax.f32 %v487, 0.0
    %v493 = vpack.c.bf16 %v492, %v492
    %s494 = scalar_lea.vmem [#allocation7], 192
    %v495 = vld [vmem:[%s494] sm:$0xf]
    %v496 = vld [vmem:[%s494 + $0x4] sm:$0xf]
    %v497 = vld [vmem:[%s494 + $0x8] sm:$0xf]
    %v498 = vld [vmem:[%s494 + $0xc] sm:$0xf]
    %v499 = vld [vmem:[%s494 + $0x10] sm:$0xf]
    %v500 = vld [vmem:[%s494 + $0x14] sm:$0xf]
    %v501 = vld [vmem:[%s494 + $0x18] sm:$0xf]
    %v502 = vld [vmem:[%s494 + $0x1c] sm:$0xf]
    %v503 = vld [vmem:[%s494 + $0x20] sm:$0xf]
    %v504 = vld [vmem:[%s494 + $0x24] sm:$0xf]
    %v505 = vld [vmem:[%s494 + $0x28] sm:$0xf]
    %v506 = vld [vmem:[%s494 + $0x2c] sm:$0xf]
    %v507 = vld [vmem:[%s494 + $0x30] sm:$0xf]
    %v508 = vld [vmem:[%s494 + $0x34] sm:$0xf]
    %v509 = vld [vmem:[%s494 + $0x38] sm:$0xf]
    %v510 = vld [vmem:[%s494 + $0x3c] sm:$0xf]
    %s511 = scalar_lea.vmem %s4, 3
    %v512 = vld [vmem:[%s511] sm:$0x1]
    %v514 = vlaneseq
    %v515 = vshrl.u32 %v514, 7
    %v516 = vsub.s32 0, %v515
    %v517 = vrot.slane %v512, %v516
    %v535 = vunpack.c.l.b16 %v495
    %v536 = vunpack.c.l.b16 %v496
    %v537 = vunpack.c.l.b16 %v497
    %v538 = vunpack.c.l.b16 %v498
    %v539 = vunpack.c.l.b16 %v499
    %v540 = vunpack.c.l.b16 %v500
    %v541 = vunpack.c.l.b16 %v501
    %v542 = vunpack.c.l.b16 %v502
    %v543 = vunpack.c.l.b16 %v503
    %v544 = vunpack.c.l.b16 %v504
    %v545 = vunpack.c.l.b16 %v505
    %v546 = vunpack.c.l.b16 %v506
    %v547 = vunpack.c.l.b16 %v507
    %v548 = vunpack.c.l.b16 %v508
    %v549 = vunpack.c.l.b16 %v509
    %v550 = vunpack.c.l.b16 %v510
    %v551 = vpack.c.b16 %v536, %v535
    %v552 = vpack.c.b16 %v538, %v537
    %v553 = vpack.c.b16 %v540, %v539
    %v554 = vpack.c.b16 %v542, %v541
    %v555 = vpack.c.b16 %v544, %v543
    %v556 = vpack.c.b16 %v546, %v545
    %v557 = vpack.c.b16 %v548, %v547
    %v558 = vpack.c.b16 %v550, %v549
    %567 = vmatprep.subr.bf16.mxu0 0
    %568 = vmatpush1.bf16.msra.mxu0 %v558
    %569 = vmatprep.subr.bf16.mxu0 0
    %570 = vmatpush1.bf16.msra.mxu0 %v557
    %571 = vmatprep.subr.bf16.mxu0 0
    %572 = vmatpush1.bf16.msra.mxu0 %v556
    %573 = vmatprep.subr.bf16.mxu0 0
    %574 = vmatpush1.bf16.msra.mxu0 %v555
    %575 = vmatprep.subr.bf16.mxu0 0
    %576 = vmatpush1.bf16.msra.mxu0 %v554
    %577 = vmatprep.subr.bf16.mxu0 0
    %578 = vmatpush1.bf16.msra.mxu0 %v553
    %579 = vmatprep.subr.bf16.mxu0 0
    %580 = vmatpush1.bf16.msra.mxu0 %v552
    %581 = vmatprep.subr.bf16.mxu0 0
    %582 = vmatpush1.bf16.msra.mxu0 %v551
    %583 = vmatprep.subr.bf16.mxu0 0
    %584 = vmatpush2.bf16.msra.mxu0 0
    %585 = vmatprep.subr.bf16.mxu0 0
    %586 = vmatpush2.bf16.msra.mxu0 0
    %587 = vmatprep.subr.bf16.mxu0 0
    %588 = vmatpush2.bf16.msra.mxu0 0
    %589 = vmatprep.subr.bf16.mxu0 0
    %590 = vmatpush2.bf16.msra.mxu0 0
    %591 = vmatprep.subr.bf16.mxu0 0
    %592 = vmatpush2.bf16.msra.mxu0 0
    %593 = vmatprep.subr.bf16.mxu0 0
    %594 = vmatpush2.bf16.msra.mxu0 0
    %595 = vmatprep.subr.bf16.mxu0 0
    %596 = vmatpush2.bf16.msra.mxu0 0
    %597 = vmatprep.subr.bf16.mxu0 0
    %598 = vmatpush2.bf16.msra.mxu0 0
    %599 = vmatprep.mubr.bf16.mxu0 0
    %600 = vmatmul.mubr.bf16.gmra.mxu0 %v493
    %v601 = vpop.f32.mrf.mxu0
    %v602 = vadd.f32 %v517, %v601
    %v603 = vpop.f32.mrf.mxu0
    %v604 = vpop.f32.mrf.mxu0
    %v605 = vpop.f32.mrf.mxu0
    %606 = vdwg.mxu0
    %v607 = vmax.f32 %v602, 0.0
    %v608 = vpack.c.bf16 %v607, %v607
    %v609 = vld [vmem:[#allocation8] sm:$0xf]
    %v610 = vld [vmem:[#allocation8 + $0x4] sm:$0xf]
    %v611 = vld [vmem:[#allocation8 + $0x8] sm:$0xf]
    %v612 = vld [vmem:[#allocation8 + $0xc] sm:$0xf]
    %v613 = vld [vmem:[#allocation8 + $0x10] sm:$0xf]
    %v614 = vld [vmem:[#allocation8 + $0x14] sm:$0xf]
    %v615 = vld [vmem:[#allocation8 + $0x18] sm:$0xf]
    %v616 = vld [vmem:[#allocation8 + $0x1c] sm:$0xf]
    %v617 = vld [vmem:[#allocation8 + $0x20] sm:$0xf]
    %v618 = vld [vmem:[#allocation8 + $0x24] sm:$0xf]
    %v619 = vld [vmem:[#allocation8 + $0x28] sm:$0xf]
    %v620 = vld [vmem:[#allocation8 + $0x2c] sm:$0xf]
    %v621 = vld [vmem:[#allocation8 + $0x30] sm:$0xf]
    %v622 = vld [vmem:[#allocation8 + $0x34] sm:$0xf]
    %v623 = vld [vmem:[#allocation8 + $0x38] sm:$0xf]
    %v624 = vld [vmem:[#allocation8 + $0x3c] sm:$0xf]
    %v625 = vld [vmem:[%s6] sm:$0x1]
    %v627 = vlaneseq
    %v628 = vshrl.u32 %v627, 7
    %v629 = vsub.s32 0, %v628
    %v630 = vrot.slane %v625, %v629
    %v648 = vunpack.c.l.b16 %v609
    %v649 = vunpack.c.l.b16 %v610
    %v650 = vunpack.c.l.b16 %v611
    %v651 = vunpack.c.l.b16 %v612
    %v652 = vunpack.c.l.b16 %v613
    %v653 = vunpack.c.l.b16 %v614
    %v654 = vunpack.c.l.b16 %v615
    %v655 = vunpack.c.l.b16 %v616
    %v656 = vunpack.c.l.b16 %v617
    %v657 = vunpack.c.l.b16 %v618
    %v658 = vunpack.c.l.b16 %v619
    %v659 = vunpack.c.l.b16 %v620
    %v660 = vunpack.c.l.b16 %v621
    %v661 = vunpack.c.l.b16 %v622
    %v662 = vunpack.c.l.b16 %v623
    %v663 = vunpack.c.l.b16 %v624
    %v664 = vpack.c.b16 %v649, %v648
    %v665 = vpack.c.b16 %v651, %v650
    %v666 = vpack.c.b16 %v653, %v652
    %v667 = vpack.c.b16 %v655, %v654
    %v668 = vpack.c.b16 %v657, %v656
    %v669 = vpack.c.b16 %v659, %v658
    %v670 = vpack.c.b16 %v661, %v660
    %v671 = vpack.c.b16 %v663, %v662
    %680 = vmatprep.subr.bf16.mxu0 0
    %681 = vmatpush1.bf16.msra.mxu0 %v671
    %682 = vmatprep.subr.bf16.mxu0 0
    %683 = vmatpush1.bf16.msra.mxu0 %v670
    %684 = vmatprep.subr.bf16.mxu0 0
    %685 = vmatpush1.bf16.msra.mxu0 %v669
    %686 = vmatprep.subr.bf16.mxu0 0
    %687 = vmatpush1.bf16.msra.mxu0 %v668
    %688 = vmatprep.subr.bf16.mxu0 0
    %689 = vmatpush1.bf16.msra.mxu0 %v667
    %690 = vmatprep.subr.bf16.mxu0 0
    %691 = vmatpush1.bf16.msra.mxu0 %v666
    %692 = vmatprep.subr.bf16.mxu0 0
    %693 = vmatpush1.bf16.msra.mxu0 %v665
    %694 = vmatprep.subr.bf16.mxu0 0
    %695 = vmatpush1.bf16.msra.mxu0 %v664
    %696 = vmatprep.subr.bf16.mxu0 0
    %697 = vmatpush2.bf16.msra.mxu0 0
    %698 = vmatprep.subr.bf16.mxu0 0
    %699 = vmatpush2.bf16.msra.mxu0 0
    %700 = vmatprep.subr.bf16.mxu0 0
    %701 = vmatpush2.bf16.msra.mxu0 0
    %702 = vmatprep.subr.bf16.mxu0 0
    %703 = vmatpush2.bf16.msra.mxu0 0
    %704 = vmatprep.subr.bf16.mxu0 0
    %705 = vmatpush2.bf16.msra.mxu0 0
    %706 = vmatprep.subr.bf16.mxu0 0
    %707 = vmatpush2.bf16.msra.mxu0 0
    %708 = vmatprep.subr.bf16.mxu0 0
    %709 = vmatpush2.bf16.msra.mxu0 0
    %710 = vmatprep.subr.bf16.mxu0 0
    %711 = vmatpush2.bf16.msra.mxu0 0
    %712 = vmatprep.mubr.bf16.mxu0 0
    %713 = vmatmul.mubr.bf16.gmra.mxu0 %v608
    %v714 = vpop.f32.mrf.mxu0
    %v715 = vadd.f32 %v630, %v714
    %v716 = vpop.f32.mrf.mxu0
    %v717 = vpop.f32.mrf.mxu0
    %v718 = vpop.f32.mrf.mxu0
    %719 = vdwg.mxu0
    %v720 = vxor.u32 %v715, 2147483648
    %v721 = vmul.f32 %v720, 1.442695
    %v722 = vpow.pop %v721
    %v723 = vadd.f32 %v722, 1.0
    %v724 = vrcp.pop %v723
    %v725 = vmul.f32 1.0, %v724
    %v726 = vpack.c.bf16 %v725, %v725
    %727 = vst [vmem:[#allocation10] sm:$0xf] %v726
    // Predicated region
    $region46: #{tpu_custom_call.1} parent=1 // pred_check
      _
    $region47: #{tpu_custom_call.1} parent=1 // pred_check_branch
      %729 = sbr.rel (0) target = $region49
    $region48: #{tpu_custom_call.1} parent=1 // pred_region
      %s731 = ssub.s32 64, 64
      %732 = vsyncadd [#allocation4], %s731
      %s734 = sshll.u32 [#allocation10], 4
      %s735 = int_to_ptr.vmem [resolvable:$true] %s734
      %737 = dma.vmem_to_hbm [thread:$0]  %s735, 64, %s7, [#allocation4]
    $region49: #{tpu_custom_call.1} parent=1 // pred_fallthru
      _
    // Predicated region
    $region50: #{tpu_custom_call.1} parent=1 // pred_check
      _
    $region51: #{tpu_custom_call.1} parent=1 // pred_check_branch
      %739 = sbr.rel (0) target = $region53
    $region52: #{tpu_custom_call.1} parent=1 // pred_region
      %740 = dma.done [#allocation4], 64
    $region53: #{tpu_custom_call.1} parent=1 // pred_fallthru
      _
    %741 = vsyncpa [#allocation3], 1
    %742 = vsyncpa [#allocation6], 1
    %743 = vsyncpa [#allocation9], 1
    %744 = vsyncpa [#allocation4], 1

</llo_original>
